<compile_context>
chip_gen: v5e
topology: v5e:2x2
jax: 0.10.0
libtpu: 0.0.40
codegen_flags: <defaults>
</compile_context>

<pallas_src>
import jax
import jax.numpy as jnp
import numpy as np
from jax.experimental import pallas as pl
from jax.experimental.pallas import tpu as pltpu

OMEGA_0 = 30.0


def _round_up(v, m):
    return ((v + m - 1) // m) * m


def sine_layer_kernel(params_ref, x_ref, w_ref, bias_ref, o_ref):
    # Linear: (tm, K) @ (K, N) -> MXU, f32 accumulation; bias broadcast over rows.
    y = jnp.dot(x_ref[...], w_ref[...], preferred_element_type=jnp.float32)
    y = y + bias_ref[...]

    amp = params_ref[0]    # exp(a)           (precomputed in wrapper)
    scale = params_ref[1]  # exp(b) * omega_0 (precomputed in wrapper)
    c = params_ref[2]
    d = params_ref[3]

    # Modulated sine activation, all in f32 (VPU/EUP elementwise).
    out = amp * jnp.sin(scale * y + c) + d
    o_ref[...] = out.astype(o_ref.dtype)


def sine_layer_forward(x, weight_t, bias, a_param, b_param, c_param, d_param,
                       *, omega_0=OMEGA_0, tm=512,
                       input_dtype=jnp.bfloat16, out_dtype=jnp.float32):
    """x: [M, K], weight_t: [K, N] (pre-transposed), bias: [N], params: scalars."""
    M, K = x.shape
    Kw, N = weight_t.shape
    assert K == Kw

    # Lane-dense output: pad N to a multiple of 128 (avoids masked vst stores).
    N_pad = _round_up(N, 128)

    in_bytes = jnp.dtype(input_dtype).itemsize

    # Row tile: multiple of 16, capped by (padded) M, shrunk to fit VMEM budget.
    GRAN = 16
    tm_eff = _round_up(min(max(tm, GRAN), _round_up(M, GRAN)), GRAN)

    def vmem_bytes(t):
        x_b = 2 * t * K * in_bytes          # x tile, double-buffered
        w_b = 2 * K * N_pad * in_bytes      # resident weight (Pallas still allocs 2 bufs)
        b_b = 2 * 1 * N_pad * 4             # bias row
        o_b = 2 * t * N_pad * 4             # output tile, double-buffered
        return x_b + w_b + b_b + o_b

    VMEM_BUDGET = 12 * 1024 * 1024  # safe under v5e 16 MiB / v6e+v7x 32 MiB scoped default
    while tm_eff > GRAN and vmem_bytes(tm_eff) > VMEM_BUDGET:
        tm_eff -= GRAN
    # TODO(synk): for very large K*N the resident weight alone can exceed budget;
    # add an N grid axis (tiled weight) in that regime.

    M_pad = _round_up(M, tm_eff)

    # Pad + cast inputs.
    x_c = x.astype(input_dtype)
    x_p = jnp.pad(x_c, ((0, M_pad - M), (0, 0))) if M_pad != M else x_c
    w_c = weight_t.astype(input_dtype)
    w_p = jnp.pad(w_c, ((0, 0), (0, N_pad - N))) if N_pad != N else w_c
    b_c = bias.reshape(1, N).astype(jnp.float32)
    b_p = jnp.pad(b_c, ((0, 0), (0, N_pad - N))) if N_pad != N else b_c

    # Hoist scalar transcendentals out of the kernel: amp, scale, c, d.
    a_f = jnp.asarray(a_param, jnp.float32)
    b_f = jnp.asarray(b_param, jnp.float32)
    params = jnp.stack([
        jnp.exp(a_f),
        jnp.exp(b_f) * jnp.float32(omega_0),
        jnp.asarray(c_param, jnp.float32),
        jnp.asarray(d_param, jnp.float32),
    ])

    out = pl.pallas_call(
        sine_layer_kernel,
        out_shape=jax.ShapeDtypeStruct((M_pad, N_pad), out_dtype),
        grid_spec=pltpu.PrefetchScalarGridSpec(
            num_scalar_prefetch=0,
            grid=(M_pad // tm_eff,),
            in_specs=[
                pl.BlockSpec(memory_space=pltpu.MemorySpace.SMEM),   # (4,) scalars
                pl.BlockSpec((tm_eff, K), lambda i: (i, 0)),         # x tile
                pl.BlockSpec((K, N_pad), lambda i: (0, 0)),          # full (resident) weight
                pl.BlockSpec((1, N_pad), lambda i: (0, 0)),          # bias row
            ],
            out_specs=pl.BlockSpec((tm_eff, N_pad), lambda i: (i, 0)),
        ),
        compiler_params=pltpu.CompilerParams(
            dimension_semantics=("parallel",),  # shards across v7x's 2 TensorCores
        ),
    )(params, x_p, w_p, b_p)

    return out[:M, :N]


def init_sine_layer_params(key, in_features, out_features, is_first=False, omega_0=OMEGA_0):
    """Deterministic init matching SineLayer.init_weights (uniform ranges)."""
    kw, kb = jax.random.split(key)
    if is_first:
        bound = 1.0 / in_features
    else:
        bound = np.sqrt(6.0 / in_features) / omega_0
    # PyTorch stores weight as [out_features, in_features]; we keep it
    # pre-transposed as [in_features, out_features] for the kernel.
    weight_t = jax.random.uniform(
        kw, (in_features, out_features), minval=-bound, maxval=bound, dtype=jnp.float32
    )
    # nn.Linear default bias init: U(-1/sqrt(in), 1/sqrt(in))
    bbound = 1.0 / np.sqrt(in_features)
    bias = jax.random.uniform(
        kb, (out_features,), minval=-bbound, maxval=bbound, dtype=jnp.float32
    )
    return weight_t, bias


def reference_forward_f32(x, weight_t, bias, a, b, c, d, omega_0=OMEGA_0):
    y = x.astype(jnp.float32) @ weight_t.astype(jnp.float32) + bias
    return jnp.exp(a) * jnp.sin(jnp.exp(b) * omega_0 * y + c) + d


def reference_forward_bf16_matmul(x, weight_t, bias, a, b, c, d, omega_0=OMEGA_0):
    # Mirrors the kernel's bf16-input / f32-accumulate matmul numerics.
    y = jnp.dot(x.astype(jnp.bfloat16), weight_t.astype(jnp.bfloat16),
                preferred_element_type=jnp.float32) + bias
    return jnp.exp(a) * jnp.sin(jnp.exp(b) * omega_0 * y + c) + d


if __name__ == "__main__":
    key = jax.random.PRNGKey(0)
    k_in, k_w, k_p = jax.random.split(key, 3)

    batch = 16
    in_features = 32
    out_features = 64

    x = jax.random.normal(k_in, (batch, in_features), dtype=jnp.float32)
    weight_t, bias = init_sine_layer_params(k_w, in_features, out_features, is_first=False)

    pa, pb, pc, pd = jax.random.normal(k_p, (4,), dtype=jnp.float32) * 0.1
    a_param, b_param, c_param, d_param = float(pa), float(pb), float(pc), float(pd)

    # 1) Default fast path: bf16 matmul inputs, f32 accumulation + activation.
    out_bf16 = sine_layer_forward(x, weight_t, bias, a_param, b_param, c_param, d_param)
    out_bf16 = jax.block_until_ready(out_bf16)
    ref_bf16 = jax.block_until_ready(
        reference_forward_bf16_matmul(x, weight_t, bias, a_param, b_param, c_param, d_param))
    np.testing.assert_allclose(np.asarray(out_bf16), np.asarray(ref_bf16),
                               rtol=1e-4, atol=1e-4)
    # Sanity vs. exact f32 semantics (bf16 rounding only).
    ref_f32 = jax.block_until_ready(
        reference_forward_f32(x, weight_t, bias, a_param, b_param, c_param, d_param))
    np.testing.assert_allclose(np.asarray(out_bf16), np.asarray(ref_f32),
                               rtol=5e-2, atol=5e-2)

    # 2) Full-precision path: exact forward semantics of the PyTorch module.
    out_f32 = sine_layer_forward(x, weight_t, bias, a_param, b_param, c_param, d_param,
                                 input_dtype=jnp.float32)
    out_f32 = jax.block_until_ready(out_f32)
    np.testing.assert_allclose(np.asarray(out_f32), np.asarray(ref_f32),
                               rtol=2e-5, atol=2e-5)

    print("KERNEL_OK")
</pallas_src>

<mosaic_0001>
module attributes {stable_mosaic.version = 11 : i64} {
  func.func @sine_layer_kernel(%arg0: i32, %arg1: memref<4xf32, #tpu.memory_space<smem>>, %arg2: memref<16x32xbf16, #tpu.memory_space<vmem>>, %arg3: memref<32x128xbf16, #tpu.memory_space<vmem>>, %arg4: memref<1x128xf32, #tpu.memory_space<vmem>>, %arg5: memref<16x128xf32, #tpu.memory_space<vmem>>) attributes {dimension_semantics = [#tpu.dimension_semantics<parallel>], iteration_bounds = array<i64: 1>, scalar_prefetch = 0 : i64, scratch_operands = 0 : i64, tpu.core_type = #tpu.core_type<tc>, window_params = [{transform_indices = @transform_0, window_bounds = array<i64: 4>}, {transform_indices = @transform_1, window_bounds = array<i64: 16, 32>}, {pipeline_mode = #tpu.pipeline_mode<synchronous>, transform_indices = @transform_2, window_bounds = array<i64: 32, 128>}, {pipeline_mode = #tpu.pipeline_mode<synchronous>, transform_indices = @transform_3, window_bounds = array<i64: 1, 128>}, {transform_indices = @transform_4, window_bounds = array<i64: 16, 128>}]} {
    %c0 = arith.constant 0 : index
    %c0_0 = arith.constant 0 : index
    %0 = vector.load %arg2[%c0, %c0_0] : memref<16x32xbf16, #tpu.memory_space<vmem>>, vector<16x32xbf16>
    %c0_1 = arith.constant 0 : index
    %c0_2 = arith.constant 0 : index
    %1 = vector.load %arg3[%c0_1, %c0_2] : memref<32x128xbf16, #tpu.memory_space<vmem>>, vector<32x128xbf16>
    %cst = arith.constant dense<0.000000e+00> : vector<16x128xf32>
    %2 = tpu.matmul %0, %1, %cst {dimension_numbers = #tpu.dot_dimension_numbers<[1], [0], [0], [1], [0, 0, 1, 1], [], []>} : vector<16x32xbf16>, vector<32x128xbf16>, vector<16x128xf32> -> vector<16x128xf32>
    %c0_3 = arith.constant 0 : index
    %c0_4 = arith.constant 0 : index
    %3 = vector.load %arg4[%c0_3, %c0_4] : memref<1x128xf32, #tpu.memory_space<vmem>>, vector<1x128xf32>
    %4 = vector.broadcast %3 : vector<1x128xf32> to vector<16x128xf32>
    %5 = arith.addf %2, %4 : vector<16x128xf32>
    %c0_5 = arith.constant 0 : index
    %6 = memref.load %arg1[%c0_5] : memref<4xf32, #tpu.memory_space<smem>>
    %c1 = arith.constant 1 : index
    %7 = memref.load %arg1[%c1] : memref<4xf32, #tpu.memory_space<smem>>
    %c2 = arith.constant 2 : index
    %8 = memref.load %arg1[%c2] : memref<4xf32, #tpu.memory_space<smem>>
    %c3 = arith.constant 3 : index
    %9 = memref.load %arg1[%c3] : memref<4xf32, #tpu.memory_space<smem>>
    %10 = vector.broadcast %7 : f32 to vector<16x128xf32>
    %11 = arith.mulf %10, %5 : vector<16x128xf32>
    %12 = vector.broadcast %8 : f32 to vector<16x128xf32>
    %13 = arith.addf %11, %12 : vector<16x128xf32>
    %14 = math.sin %13 : vector<16x128xf32>
    %15 = vector.broadcast %6 : f32 to vector<16x128xf32>
    %16 = arith.mulf %15, %14 : vector<16x128xf32>
    %17 = vector.broadcast %9 : f32 to vector<16x128xf32>
    %18 = arith.addf %16, %17 : vector<16x128xf32>
    %c0_6 = arith.constant 0 : index
    %c0_7 = arith.constant 0 : index
    %19 = vector.load %arg5[%c0_6, %c0_7] : memref<16x128xf32, #tpu.memory_space<vmem>>, vector<16x128xf32>
    tpu.vector_store %arg5[%c0_6, %c0_7], %18 {strides = array<i32>} : memref<16x128xf32, #tpu.memory_space<vmem>>, vector<16x128xf32>,
    return
  }
  func.func @transform_0(%arg0: i32) -> i32 {
    %c0_i32 = arith.constant 0 : i32
    %c0_i32_0 = arith.constant 0 : i32
    return %c0_i32 : i32
  }
  func.func @transform_1(%arg0: i32) -> (i32, i32) {
    %c0_i32 = arith.constant 0 : i32
    %c0_i32_0 = arith.constant 0 : i32
    return %arg0, %c0_i32 : i32, i32
  }
  func.func @transform_2(%arg0: i32) -> (i32, i32) {
    %c0_i32 = arith.constant 0 : i32
    %c0_i32_0 = arith.constant 0 : i32
    %c0_i32_1 = arith.constant 0 : i32
    return %c0_i32, %c0_i32_0 : i32, i32
  }
  func.func @transform_3(%arg0: i32) -> (i32, i32) {
    %c0_i32 = arith.constant 0 : i32
    %c0_i32_0 = arith.constant 0 : i32
    %c0_i32_1 = arith.constant 0 : i32
    return %c0_i32, %c0_i32_0 : i32, i32
  }
  func.func @transform_4(%arg0: i32) -> (i32, i32) {
    %c0_i32 = arith.constant 0 : i32
    %c0_i32_0 = arith.constant 0 : i32
    return %arg0, %c0_i32 : i32, i32
  }
}

</mosaic_0001>

<llo_original>
// kernel: tpu_custom_call.1
$region0: #{tpu_custom_call.1}
  #allocation0 [shape = 'u32[]', space=smem, size = 0x4, offset = 0x4, fixed_abs, tag = 'smem constant byte address 0x4 - core index']
  #allocation1 [shape = 'u32[72,128]{1,0:T(1,128)}', space=vmem, size = 0x9000, scoped, tag = 'internal scratch']
  %s0 = inlined_call_operand.hbm [shape: f32[4], index: 0, kind: input, shape index: {}]
  %s1 = inlined_call_operand.hbm [shape: bf16[16,32], index: 1, kind: input, shape index: {}]
  %s2 = inlined_call_operand.hbm [shape: bf16[32,128], index: 2, kind: input, shape index: {}]
  %s3 = inlined_call_operand.vmem [shape: f32[1,128], index: 3, kind: input, shape index: {}]
  %s4 = inlined_call_operand.hbm [shape: f32[16,128], index: 4, kind: output, shape index: {}]
  %s5 = sld [smem:[#allocation0]]
  $region38: #{tpu_custom_call.1} parent=0
    _
  %s7 = ssub.s32 1, %s5
  %s8 = scalar_select 0, %s7, %s5
  $region1: #{tpu_custom_call.1} parent=0
    #allocation2 [shape = 'u8[512]{0}', space=smem, size = 0x200, scoped, tag = 'input window, operand 0, single buffered']
    #allocation3 [shape = 's32[1]{0}', space=sflag, size = 0x4, scoped, tag = 'scoped memory for tpu_custom_call.1']
    #allocation4 [shape = 's32[1]{0}', space=sflag, size = 0x4, scoped, tag = 'scoped memory for tpu_custom_call.1']
    #allocation5 [shape = 's32[1]{0}', space=sflag, size = 0x4, scoped, tag = 'scoped memory for tpu_custom_call.1']
    #allocation6 [shape = 'u8[4096]{0}', space=vmem, size = 0x1000, scoped, tag = 'input window, operand 1, single buffered']
    #allocation7 [shape = 'u8[8192]{0}', space=vmem, size = 0x2000, scoped, tag = 'input window, operand 2, single buffered']
    #allocation8 [shape = 's32[1]{0}', space=sflag, size = 0x4, scoped, tag = 'scoped memory for tpu_custom_call.1']
    #allocation9 [shape = 'u8[8192]{0}', space=vmem, size = 0x2000, scoped, tag = 'output window, operand 0, single buffered']
    %9 = vsyncpa [#allocation5], 0
    %10 = vsyncpa [#allocation3], 0
    %11 = vsyncpa [#allocation8], 0
    %12 = vsyncpa [#allocation4], 0
    // Predicated region
    $region2: #{tpu_custom_call.1} parent=1 // pred_check
      _
    $region3: #{tpu_custom_call.1} parent=1 // pred_check_branch
      %14 = sbr.rel (0) target = $region5
    $region4: #{tpu_custom_call.1} parent=1 // pred_region
      %16 = vsyncadd [#allocation5], 0
      %s18 = sshll.u32 %s0, 4
      %s19 = int_to_ptr.hbm [resolvable:$true] %s18
      %21 = dma.hbm_to_smem %s19, 16, [#allocation2], [#allocation5]
    $region5: #{tpu_custom_call.1} parent=1 // pred_fallthru
      _
    // Predicated region
    $region6: #{tpu_custom_call.1} parent=1 // pred_check
      _
    $region7: #{tpu_custom_call.1} parent=1 // pred_check_branch
      %23 = sbr.rel (0) target = $region9
    $region8: #{tpu_custom_call.1} parent=1 // pred_region
      %25 = vsyncadd [#allocation3], 0
      %s26 = sshll.u32 %s1, 4
      %s27 = int_to_ptr.hbm [resolvable:$true] %s26
      %s28 = sshll.u32 [#allocation6], 4
      %s29 = int_to_ptr.vmem [resolvable:$true] %s28
      %34 = dma.hbm_to_vmem [thread:$0]  %s27, 128, %s29, [#allocation3], 64, 64, 4
    $region9: #{tpu_custom_call.1} parent=1 // pred_fallthru
      _
    // Predicated region
    $region10: #{tpu_custom_call.1} parent=1 // pred_check
      _
    $region11: #{tpu_custom_call.1} parent=1 // pred_check_branch
      %36 = sbr.rel (0) target = $region13
    $region12: #{tpu_custom_call.1} parent=1 // pred_region
      %38 = vsyncadd [#allocation8], 0
      %s39 = sshll.u32 %s2, 4
      %s40 = int_to_ptr.hbm [resolvable:$true] %s39
      %s41 = sshll.u32 [#allocation7], 4
      %s42 = int_to_ptr.vmem [resolvable:$true] %s41
      %47 = dma.hbm_to_vmem [thread:$0]  %s40, 256, %s42, [#allocation8], 64, 64, 4
    $region13: #{tpu_custom_call.1} parent=1 // pred_fallthru
      _
    // Predicated region
    $region14: #{tpu_custom_call.1} parent=1 // pred_check
      _
    $region15: #{tpu_custom_call.1} parent=1 // pred_check_branch
      %49 = sbr.rel (0) target = $region17
    $region16: #{tpu_custom_call.1} parent=1 // pred_region
      _
    $region17: #{tpu_custom_call.1} parent=1 // pred_fallthru
      _
    // Predicated region
    $region18: #{tpu_custom_call.1} parent=1 // pred_check
      _
    $region19: #{tpu_custom_call.1} parent=1 // pred_check_branch
      %51 = sbr.rel (0) target = $region21
    $region20: #{tpu_custom_call.1} parent=1 // pred_region
      %53 = dma.done [#allocation5], 16
    $region21: #{tpu_custom_call.1} parent=1 // pred_fallthru
      _
    // Predicated region
    $region22: #{tpu_custom_call.1} parent=1 // pred_check
      _
    $region23: #{tpu_custom_call.1} parent=1 // pred_check_branch
      %55 = sbr.rel (0) target = $region25
    $region24: #{tpu_custom_call.1} parent=1 // pred_region
      %57 = dma.done [#allocation3], 128
    $region25: #{tpu_custom_call.1} parent=1 // pred_fallthru
      _
    // Predicated region
    $region26: #{tpu_custom_call.1} parent=1 // pred_check
      _
    $region27: #{tpu_custom_call.1} parent=1 // pred_check_branch
      %59 = sbr.rel (0) target = $region29
    $region28: #{tpu_custom_call.1} parent=1 // pred_region
      %61 = dma.done [#allocation8], 256
    $region29: #{tpu_custom_call.1} parent=1 // pred_fallthru
      _
    %62 = sfence
    %v64 = vld [vmem:[#allocation6] sm:$0xf]
    %v65 = vld [vmem:[#allocation6 + $0x4] sm:$0xf]
    %v66 = vld [vmem:[#allocation7] sm:$0xf]
    %v67 = vld [vmem:[#allocation7 + $0x4] sm:$0xf]
    %v68 = vld [vmem:[#allocation7 + $0x8] sm:$0xf]
    %v69 = vld [vmem:[#allocation7 + $0xc] sm:$0xf]
    %v70 = vld [vmem:[%s3] sm:$0x1]
    %v72 = vperm.slane %v70, 0
    %v76 = vunpack.c.l.b16 %v64
    %v77 = vunpack.c.l.b16 %v65
    %v78 = vpack.c.b16 %v77, %v76
    %v83 = vunpack.c.l.b16 %v66
    %v84 = vunpack.c.l.b16 %v67
    %v85 = vunpack.c.l.b16 %v68
    %v86 = vunpack.c.l.b16 %v69
    %v87 = vpack.c.b16 %v84, %v83
    %v88 = vpack.c.b16 %v86, %v85
    %vm91 = vcmask 261120
    %v93 = vsel %vm91, %v78, 0
    %95 = vmatpush.bf16.msra.mxu0 0
    %96 = vmatpush.bf16.msra.mxu0 0
    %97 = vmatpush.bf16.msra.mxu0 0
    %98 = vmatpush.bf16.msra.mxu0 0
    %99 = vmatpush.bf16.msra.mxu0 0
    %100 = vmatpush.bf16.msra.mxu0 0
    %101 = vmatpush.bf16.msra.mxu0 %v88
    %102 = vmatpush.bf16.msra.mxu0 %v87
    %103 = vmatmul.bf16.gmra.mxu0 %v93
    %v104 = vpop.f32.mrf.mxu0
    %v105 = vadd.f32 %v72, %v104
    %v106 = vpop.f32.mrf.mxu0
    %v107 = vadd.f32 %v72, %v106
    %108 = vdwg.mxu0
    %s109 = sld [smem:[#allocation2]]
    %s110 = sld [smem:[#allocation2 + $0x1]]
    %s111 = sld [smem:[#allocation2 + $0x2]]
    %s112 = sld [smem:[#allocation2 + $0x3]]
    %v113 = vstv %s110
    %v114 = vmul.f32 %v113, %v105
    %v115 = vmul.f32 %v113, %v107
    %v116 = vstv %s111
    %v117 = vadd.f32 %v114, %v116
    %v118 = vadd.f32 %v115, %v116
    %v119 = vand.u32 2147483647, %v117
    %vm120 = vcmp.le.f32.partialorder %v119, 0.7853982
    %vm121 = vcmp.lt.s32.totalorder %v117, 0
    %v122 = vand.u32 %v117, 2139095040
    %v123 = vshrl.u32 %v122, 23
    %v124 = vsub.s32 %v123, 127
    %v125 = vand.u32 2147483647, %v117
    %v126 = vand.u32 %v125, 8388607
    %v127 = vor.u32 %v126, 8388608
    %v128 = vsub.s32 0, %v127
    %v129 = vadd.s32 %v124, 1
    %vm130 = vcmp.gt.s32.totalorder %v129, 0
    %v131 = vsel %vm130, %v129, 0
    %v132 = vshrl.u32 %v131, 5
    %v133 = vand.u32 %v131, 31
    %v134 = vsub.s32 32, %v133
    %v135 = vshrl.u32 683565275, %v134
    %v136 = vshll.u32 683565275, %v133
    %v137 = vshrl.u32 2475754826, %v134
    %v138 = vor.u32 %v136, %v137
    %v139 = vshll.u32 2475754826, %v133
    %v140 = vshrl.u32 2131351028, %v134
    %v141 = vor.u32 %v139, %v140
    %v142 = vshll.u32 2131351028, %v133
    %v143 = vshrl.u32 2102212464, %v134
    %v144 = vor.u32 %v142, %v143
    %v145 = vshll.u32 2102212464, %v133
    %v146 = vshrl.u32 920167782, %v134
    %v147 = vor.u32 %v145, %v146
    %v148 = vshll.u32 920167782, %v133
    %v149 = vshrl.u32 1326507024, %v134
    %v150 = vor.u32 %v148, %v149
    %vm151 = vcmp.lt.s32.totalorder %v132, 1
    %vm152 = vcmp.lt.s32.totalorder %v132, 2
    %vm153 = vcmp.lt.s32.totalorder %v132, 3
    %vm154 = vcmp.lt.s32.totalorder %v132, 4
    %v155 = vsel %vm151, %v135, %v138
    %v156 = vsel %vm154, %v144, 2102212464
    %v157 = vsel %vm153, %v141, %v156
    %v158 = vsel %vm152, %v155, %v157
    %v159 = vsel %vm151, %v138, %v141
    %v160 = vsel %vm154, %v147, 920167782
    %v161 = vsel %vm153, %v144, %v160
    %v162 = vsel %vm152, %v159, %v161
    %v163 = vsel %vm151, %v141, %v144
    %v164 = vsel %vm154, %v150, 1326507024
    %v165 = vsel %vm153, %v147, %v164
    %v166 = vsel %vm152, %v163, %v165
    %v167 = vshll.u32 %v127, 8
    %v168 = vand.u32 %v167, 65535
    %v169 = vshrl.u32 %v167, 16
    %v170 = vand.u32 %v166, 65535
    %v171 = vshrl.u32 %v166, 16
    %v172 = vmul.u32 %v168, %v170
    %v173 = vmul.u32 %v168, %v171
    %v174 = vmul.u32 %v169, %v170
    %v175 = vmul.u32 %v169, %v171
    %v176 = vshll.u32 %v173, 16
    %v177 = vshrl.u32 %v173, 16
    %v178 = vshll.u32 %v174, 16
    %v179 = vshrl.u32 %v174, 16
    %vm180 = vc.u32 %v172, %v176
    %v181 = vsel %vm180, 1, 0
    %v182 = vadd.s32 %v172, %v176
    %v183 = vadd.s32 %v175, %v181
    %vm184 = vc.u32 %v182, %v178
    %v185 = vsel %vm184, 1, 0
    %v186 = vadd.s32 %v182, %v178
    %v187 = vadd.s32 %v183, %v185
    %v188 = vadd.s32 %v187, %v177
    %v189 = vadd.s32 %v188, %v179
    %v190 = vand.u32 %v167, 65535
    %v191 = vshrl.u32 %v167, 16
    %v192 = vand.u32 %v162, 65535
    %v193 = vshrl.u32 %v162, 16
    %v194 = vmul.u32 %v190, %v192
    %v195 = vmul.u32 %v190, %v193
    %v196 = vmul.u32 %v191, %v192
    %v197 = vmul.u32 %v191, %v193
    %v198 = vshll.u32 %v195, 16
    %v199 = vshrl.u32 %v195, 16
    %v200 = vshll.u32 %v196, 16
    %v201 = vshrl.u32 %v196, 16
    %vm202 = vc.u32 %v194, %v198
    %v203 = vsel %vm202, 1, 0
    %v204 = vadd.s32 %v194, %v198
    %v205 = vadd.s32 %v197, %v203
    %vm206 = vc.u32 %v204, %v200
    %v207 = vsel %vm206, 1, 0
    %v208 = vadd.s32 %v204, %v200
    %v209 = vadd.s32 %v205, %v207
    %v210 = vadd.s32 %v209, %v199
    %v211 = vadd.s32 %v210, %v201
    %v212 = vmul.u32 %v167, %v158
    %v213 = vadd.s32 %v189, %v208
    %vm214 = vc.u32 %v189, %v208
    %v215 = vadd.s32 %v211, 1
    %v216 = vsel %vm214, %v215, %v211
    %v217 = vadd.s32 %v212, %v216
    %v218 = vadd.s32 %v217, 536870912
    %v219 = vshrl.u32 %v218, 30
    %v220 = vshll.u32 %v219, 30
    %v221 = vsub.s32 %v217, %v220
    %vm222 = vcmp.lt.s32.totalorder %v221, 0
    %v223 = vsub.s32 0, %v221
    %v224 = vsel %vm222, %v223, %v221
    %v225 = vclz %v224
    %v226 = vsub.s32 %v225, 2
    %vm227 = vcmp.gt.s32.totalorder 0, %v226
    %v228 = vsel %vm227, 0, %v226
    %v229 = vsub.s32 32, %v228
    %v230 = vshll.u32 %v221, %v228
    %v231 = vshrl.u32 %v213, %v229
    %v232 = vor.u32 %v230, %v231
    %v233 = vsub.s32 4294967266, %v228
    %v234 = vadd.s32 %v233, 127
    %v235 = vshll.u32 %v234, 23
    %v236 = vor.u32 4788187, %v235
    %v237 = vand.u32 2147483647, %v236
    %v239 = vcvt.s32.f32 %v232
    %v240 = vmul.f32 %v239, %v237
    %v241 = vxor.u32 %v240, 2147483648
    %v242 = vsel %vm121, %v241, %v240
    %v243 = vsub.s32 4, %v219
    %v244 = vsel %vm121, %v243, %v219
    %v245 = vsel %vm120, %v117, %v242
    %v246 = vsel %vm120, 0, %v244
    %v247 = vmul.f32 %v245, %v245
    %v248 = vmul.f32 %v247, -0.001358992
    %v249 = vadd.f32 %v248, 0.041655596
    %v250 = vmul.f32 %v247, %v249
    %v251 = vadd.f32 %v250, -0.4999988
    %v252 = vmul.f32 %v247, %v251
    %v253 = vadd.f32 1.0, %v252
    %v254 = vmul.f32 %v245, %v245
    %v255 = vmul.f32 %v254, -0.00019511016
    %v256 = vadd.f32 %v255, 0.008332121
    %v257 = vmul.f32 %v254, %v256
    %v258 = vadd.f32 %v257, -0.16666654
    %v259 = vmul.f32 %v254, %v258
    %v260 = vadd.f32 %v259, 1.0
    %v261 = vmul.f32 %v260, %v245
    %vm262 = vweird.f32 %v117
    %v263 = vadd.s32 %v246, 3
    %v264 = vand.u32 %v263, 3
    %vm265 = vcmp.lt.s32.totalorder %v264, 2
    %vm266 = vcmp.eq.s32.totalorder %v264, 0
    %v267 = vxor.u32 %v261, 2147483648
    %v268 = vsel %vm266, %v253, %v267
    %vm269 = vcmp.eq.s32.totalorder %v264, 2
    %v270 = vxor.u32 %v253, 2147483648
    %v271 = vsel %vm269, %v270, %v261
    %v272 = vsel %vm265, %v268, %v271
    %v273 = vsel %vm262, nan, %v272
    %v274 = vand.u32 2147483647, %v118
    %vm275 = vcmp.le.f32.partialorder %v274, 0.7853982
    %vm276 = vcmp.lt.s32.totalorder %v118, 0
    %v277 = vand.u32 %v118, 2139095040
    %v278 = vshrl.u32 %v277, 23
    %v279 = vsub.s32 %v278, 127
    %v280 = vand.u32 2147483647, %v118
    %v281 = vand.u32 %v280, 8388607
    %v282 = vor.u32 %v281, 8388608
    %v283 = vsub.s32 0, %v282
    %v284 = vadd.s32 %v279, 1
    %vm285 = vcmp.gt.s32.totalorder %v284, 0
    %v286 = vsel %vm285, %v284, 0
    %v287 = vshrl.u32 %v286, 5
    %v288 = vand.u32 %v286, 31
    %v289 = vsub.s32 32, %v288
    %v290 = vshrl.u32 683565275, %v289
    %v291 = vshll.u32 683565275, %v288
    %v292 = vshrl.u32 2475754826, %v289
    %v293 = vor.u32 %v291, %v292
    %v294 = vshll.u32 2475754826, %v288
    %v295 = vshrl.u32 2131351028, %v289
    %v296 = vor.u32 %v294, %v295
    %v297 = vshll.u32 2131351028, %v288
    %v298 = vshrl.u32 2102212464, %v289
    %v299 = vor.u32 %v297, %v298
    %v300 = vshll.u32 2102212464, %v288
    %v301 = vshrl.u32 920167782, %v289
    %v302 = vor.u32 %v300, %v301
    %v303 = vshll.u32 920167782, %v288
    %v304 = vshrl.u32 1326507024, %v289
    %v305 = vor.u32 %v303, %v304
    %vm306 = vcmp.lt.s32.totalorder %v287, 1
    %vm307 = vcmp.lt.s32.totalorder %v287, 2
    %vm308 = vcmp.lt.s32.totalorder %v287, 3
    %vm309 = vcmp.lt.s32.totalorder %v287, 4
    %v310 = vsel %vm306, %v290, %v293
    %v311 = vsel %vm309, %v299, 2102212464
    %v312 = vsel %vm308, %v296, %v311
    %v313 = vsel %vm307, %v310, %v312
    %v314 = vsel %vm306, %v293, %v296
    %v315 = vsel %vm309, %v302, 920167782
    %v316 = vsel %vm308, %v299, %v315
    %v317 = vsel %vm307, %v314, %v316
    %v318 = vsel %vm306, %v296, %v299
    %v319 = vsel %vm309, %v305, 1326507024
    %v320 = vsel %vm308, %v302, %v319
    %v321 = vsel %vm307, %v318, %v320
    %v322 = vshll.u32 %v282, 8
    %v323 = vand.u32 %v322, 65535
    %v324 = vshrl.u32 %v322, 16
    %v325 = vand.u32 %v321, 65535
    %v326 = vshrl.u32 %v321, 16
    %v327 = vmul.u32 %v323, %v325
    %v328 = vmul.u32 %v323, %v326
    %v329 = vmul.u32 %v324, %v325
    %v330 = vmul.u32 %v324, %v326
    %v331 = vshll.u32 %v328, 16
    %v332 = vshrl.u32 %v328, 16
    %v333 = vshll.u32 %v329, 16
    %v334 = vshrl.u32 %v329, 16
    %vm335 = vc.u32 %v327, %v331
    %v336 = vsel %vm335, 1, 0
    %v337 = vadd.s32 %v327, %v331
    %v338 = vadd.s32 %v330, %v336
    %vm339 = vc.u32 %v337, %v333
    %v340 = vsel %vm339, 1, 0
    %v341 = vadd.s32 %v337, %v333
    %v342 = vadd.s32 %v338, %v340
    %v343 = vadd.s32 %v342, %v332
    %v344 = vadd.s32 %v343, %v334
    %v345 = vand.u32 %v322, 65535
    %v346 = vshrl.u32 %v322, 16
    %v347 = vand.u32 %v317, 65535
    %v348 = vshrl.u32 %v317, 16
    %v349 = vmul.u32 %v345, %v347
    %v350 = vmul.u32 %v345, %v348
    %v351 = vmul.u32 %v346, %v347
    %v352 = vmul.u32 %v346, %v348
    %v353 = vshll.u32 %v350, 16
    %v354 = vshrl.u32 %v350, 16
    %v355 = vshll.u32 %v351, 16
    %v356 = vshrl.u32 %v351, 16
    %vm357 = vc.u32 %v349, %v353
    %v358 = vsel %vm357, 1, 0
    %v359 = vadd.s32 %v349, %v353
    %v360 = vadd.s32 %v352, %v358
    %vm361 = vc.u32 %v359, %v355
    %v362 = vsel %vm361, 1, 0
    %v363 = vadd.s32 %v359, %v355
    %v364 = vadd.s32 %v360, %v362
    %v365 = vadd.s32 %v364, %v354
    %v366 = vadd.s32 %v365, %v356
    %v367 = vmul.u32 %v322, %v313
    %v368 = vadd.s32 %v344, %v363
    %vm369 = vc.u32 %v344, %v363
    %v370 = vadd.s32 %v366, 1
    %v371 = vsel %vm369, %v370, %v366
    %v372 = vadd.s32 %v367, %v371
    %v373 = vadd.s32 %v372, 536870912
    %v374 = vshrl.u32 %v373, 30
    %v375 = vshll.u32 %v374, 30
    %v376 = vsub.s32 %v372, %v375
    %vm377 = vcmp.lt.s32.totalorder %v376, 0
    %v378 = vsub.s32 0, %v376
    %v379 = vsel %vm377, %v378, %v376
    %v380 = vclz %v379
    %v381 = vsub.s32 %v380, 2
    %vm382 = vcmp.gt.s32.totalorder 0, %v381
    %v383 = vsel %vm382, 0, %v381
    %v384 = vsub.s32 32, %v383
    %v385 = vshll.u32 %v376, %v383
    %v386 = vshrl.u32 %v368, %v384
    %v387 = vor.u32 %v385, %v386
    %v388 = vsub.s32 4294967266, %v383
    %v389 = vadd.s32 %v388, 127
    %v390 = vshll.u32 %v389, 23
    %v391 = vor.u32 4788187, %v390
    %v392 = vand.u32 2147483647, %v391
    %v394 = vcvt.s32.f32 %v387
    %v395 = vmul.f32 %v394, %v392
    %v396 = vxor.u32 %v395, 2147483648
    %v397 = vsel %vm276, %v396, %v395
    %v398 = vsub.s32 4, %v374
    %v399 = vsel %vm276, %v398, %v374
    %v400 = vsel %vm275, %v118, %v397
    %v401 = vsel %vm275, 0, %v399
    %v402 = vmul.f32 %v400, %v400
    %v403 = vmul.f32 %v402, -0.001358992
    %v404 = vadd.f32 %v403, 0.041655596
    %v405 = vmul.f32 %v402, %v404
    %v406 = vadd.f32 %v405, -0.4999988
    %v407 = vmul.f32 %v402, %v406
    %v408 = vadd.f32 1.0, %v407
    %v409 = vmul.f32 %v400, %v400
    %v410 = vmul.f32 %v409, -0.00019511016
    %v411 = vadd.f32 %v410, 0.008332121
    %v412 = vmul.f32 %v409, %v411
    %v413 = vadd.f32 %v412, -0.16666654
    %v414 = vmul.f32 %v409, %v413
    %v415 = vadd.f32 %v414, 1.0
    %v416 = vmul.f32 %v415, %v400
    %vm417 = vweird.f32 %v118
    %v418 = vadd.s32 %v401, 3
    %v419 = vand.u32 %v418, 3
    %vm420 = vcmp.lt.s32.totalorder %v419, 2
    %vm421 = vcmp.eq.s32.totalorder %v419, 0
    %v422 = vxor.u32 %v416, 2147483648
    %v423 = vsel %vm421, %v408, %v422
    %vm424 = vcmp.eq.s32.totalorder %v419, 2
    %v425 = vxor.u32 %v408, 2147483648
    %v426 = vsel %vm424, %v425, %v416
    %v427 = vsel %vm420, %v423, %v426
    %v428 = vsel %vm417, nan, %v427
    %v429 = vstv %s109
    %v430 = vmul.f32 %v429, %v273
    %v431 = vmul.f32 %v429, %v428
    %v432 = vstv %s112
    %v433 = vadd.f32 %v430, %v432
    %v434 = vadd.f32 %v431, %v432
    %435 = vst [vmem:[#allocation9] sm:$0xff] %v433
    %436 = vst [vmem:[#allocation9 + $0x8] sm:$0xff] %v434
    // Predicated region
    $region30: #{tpu_custom_call.1} parent=1 // pred_check
      _
    $region31: #{tpu_custom_call.1} parent=1 // pred_check_branch
      %438 = sbr.rel (0) target = $region33
    $region32: #{tpu_custom_call.1} parent=1 // pred_region
      %440 = vsyncadd [#allocation4], 0
      %s441 = sshll.u32 [#allocation9], 4
      %s442 = int_to_ptr.vmem [resolvable:$true] %s441
      %s443 = sshll.u32 %s4, 4
      %s444 = int_to_ptr.hbm [resolvable:$true] %s443
      %449 = dma.vmem_to_hbm [thread:$0]  %s442, 256, %s444, [#allocation4], 128, 128, 8
    $region33: #{tpu_custom_call.1} parent=1 // pred_fallthru
      _
    // Predicated region
    $region34: #{tpu_custom_call.1} parent=1 // pred_check
      _
    $region35: #{tpu_custom_call.1} parent=1 // pred_check_branch
      %451 = sbr.rel (0) target = $region37
    $region36: #{tpu_custom_call.1} parent=1 // pred_region
      %453 = dma.done [#allocation4], 256
    $region37: #{tpu_custom_call.1} parent=1 // pred_fallthru
      _
    %454 = vsyncpa [#allocation3], 1
    %455 = vsyncpa [#allocation8], 1
    %456 = vsyncpa [#allocation4], 1
    %457 = vsyncpa [#allocation5], 1

</llo_original>
